<compile_context>
chip_gen: v6e
topology: v6e:2x2x1
jax: 0.10.0
libtpu: 0.0.40
codegen_flags: <defaults>
</compile_context>

<pallas_src>
import jax
import jax.numpy as jnp
from jax.experimental import pallas as pl
from jax.experimental.pallas import tpu as pltpu

# ---------------------------------------------------------------------------
# Problem sizes (small, consistent with an image-model forward pass)
# ---------------------------------------------------------------------------
B = 2        # batch
CIN = 4      # input channels
H = W = 16   # spatial
COUT = 32    # conv output channels / feature dim
NC = 8       # num classes
KH = KW = 3  # conv kernel
HW = H * W
KDIM = KH * KW * CIN  # 36 — im2col contraction dim


# ---------------------------------------------------------------------------
# Pallas kernel: whole batch — im2col conv matmul + bias + ReLU + MXU GAP + fc
# ---------------------------------------------------------------------------
def exportable_model_kernel(p_ref, wc_ref, bc_ref, avg_ref, wf_ref, bf_ref,
                            logits_ref, feat_ref):
    # p_ref:      (B*H*W, KDIM)   im2col patches (lane-dense)
    # wc_ref:     (KDIM, COUT)    conv weights, reshaped
    # bc_ref:     (1, COUT)       conv bias
    # avg_ref:    (B, B*H*W)      block-diagonal global-average-pool matrix
    # wf_ref:     (COUT, NC)      fc weights
    # bf_ref:     (1, NC)         fc bias
    # logits_ref: (B, NC)
    # feat_ref:   (B, COUT)

    # conv3x3 as a single MXU matmul: (B*H*W, 36) x (36, COUT)
    acc = jnp.dot(p_ref[...], wc_ref[...], preferred_element_type=jnp.float32)
    acc = jnp.maximum(acc + bc_ref[...], 0.0)                 # bias + ReLU

    # global average pool on the MXU: (B, B*H*W) x (B*H*W, COUT) -> (B, COUT)
    feat = jnp.dot(avg_ref[...], acc, preferred_element_type=jnp.float32)
    feat_ref[...] = feat

    # classifier: (B, COUT) x (COUT, NC) + bias
    logits_ref[...] = (jnp.dot(feat, wf_ref[...],
                               preferred_element_type=jnp.float32)
                       + bf_ref[...])


# ---------------------------------------------------------------------------
# Wrapper: ExportableModel.forward — returns a tuple (export compatibility)
# ---------------------------------------------------------------------------
def exportable_model_forward(x_nchw, conv_w, conv_b, fc_w, fc_b):
    """x_nchw: (B, CIN, H, W) float32. Returns tuple (logits (B, NC), features (B, COUT))."""
    # layout plumbing (wrapper-side, not compute): NCHW -> NHWC, zero-pad, im2col.
    x_nhwc = jnp.transpose(x_nchw, (0, 2, 3, 1)).astype(jnp.float32)
    x_pad = jnp.pad(x_nhwc, ((0, 0), (1, 1), (1, 1), (0, 0)))
    # (B, H, W, KH*KW, CIN) gathered tap-by-tap, flattened to (B*H*W, KDIM)
    taps = [x_pad[:, kh:kh + H, kw:kw + W, :]
            for kh in range(KH) for kw in range(KW)]
    patches = jnp.stack(taps, axis=3).reshape(B * HW, KDIM)

    wc2 = conv_w.reshape(KDIM, COUT).astype(jnp.float32)   # (kh,kw,cin) order matches im2col
    bc2 = conv_b.reshape(1, COUT).astype(jnp.float32)
    wf2 = fc_w.astype(jnp.float32)
    bf2 = fc_b.reshape(1, NC).astype(jnp.float32)

    # block-diagonal averaging matrix: feat = avg_mat @ relu(conv_out)
    row_b = jnp.arange(B, dtype=jnp.int32)[:, None]                  # (B, 1)
    col_b = (jnp.arange(B * HW, dtype=jnp.int32) // HW)[None, :]     # (1, B*HW)
    avg_mat = jnp.where(row_b == col_b, 1.0 / HW, 0.0).astype(jnp.float32)

    logits, feat = pl.pallas_call(
        exportable_model_kernel,
        out_shape=(
            jax.ShapeDtypeStruct((B, NC), jnp.float32),
            jax.ShapeDtypeStruct((B, COUT), jnp.float32),
        ),
        grid_spec=pltpu.PrefetchScalarGridSpec(
            num_scalar_prefetch=0,
            grid=(1,),  # single grid step: whole batch in one invocation
            in_specs=[
                pl.BlockSpec((B * HW, KDIM), lambda i: (0, 0)),
                pl.BlockSpec((KDIM, COUT), lambda i: (0, 0)),
                pl.BlockSpec((1, COUT), lambda i: (0, 0)),
                pl.BlockSpec((B, B * HW), lambda i: (0, 0)),
                pl.BlockSpec((COUT, NC), lambda i: (0, 0)),
                pl.BlockSpec((1, NC), lambda i: (0, 0)),
            ],
            out_specs=[
                pl.BlockSpec((B, NC), lambda i: (0, 0)),
                pl.BlockSpec((B, COUT), lambda i: (0, 0)),
            ],
        ),
        compiler_params=pltpu.CompilerParams(
            dimension_semantics=("arbitrary",)),
    )(patches, wc2, bc2, avg_mat, wf2, bf2)

    # .to_tuple() of the wrapped model output
    return (logits, feat)


# ---------------------------------------------------------------------------
# Pure-JAX reference for correctness
# ---------------------------------------------------------------------------
def reference_forward(x_nchw, conv_w, conv_b, fc_w, fc_b):
    x = jnp.transpose(x_nchw, (0, 2, 3, 1)).astype(jnp.float32)  # NHWC
    xp = jnp.pad(x, ((0, 0), (1, 1), (1, 1), (0, 0)))
    out = jnp.zeros((B, H, W, COUT), jnp.float32)
    for kh in range(KH):
        for kw in range(KW):
            out = out + jnp.einsum("bhwc,co->bhwo",
                                   xp[:, kh:kh + H, kw:kw + W, :],
                                   conv_w[kh, kw])
    out = jnp.maximum(out + conv_b[None, None, None, :], 0.0)
    feat = jnp.mean(out, axis=(1, 2))                      # (B, COUT)
    logits = feat @ fc_w + fc_b[None, :]                   # (B, NC)
    return logits, feat


if __name__ == "__main__":
    key = jax.random.PRNGKey(0)
    k_x, k_wc, k_bc, k_wf, k_bf = jax.random.split(key, 5)

    x = jax.random.normal(k_x, (B, CIN, H, W), dtype=jnp.float32)          # NCHW
    conv_w = 0.1 * jax.random.normal(k_wc, (KH, KW, CIN, COUT), jnp.float32)
    conv_b = 0.1 * jax.random.normal(k_bc, (COUT,), jnp.float32)
    fc_w = 0.1 * jax.random.normal(k_wf, (COUT, NC), jnp.float32)
    fc_b = 0.1 * jax.random.normal(k_bf, (NC,), jnp.float32)

    logits, feats = exportable_model_forward(x, conv_w, conv_b, fc_w, fc_b)
    jax.block_until_ready((logits, feats))

    ref_logits, ref_feats = reference_forward(x, conv_w, conv_b, fc_w, fc_b)
    assert jnp.allclose(logits, ref_logits, atol=1e-4, rtol=1e-4)
    assert jnp.allclose(feats, ref_feats, atol=1e-4, rtol=1e-4)

    print("KERNEL_OK")
</pallas_src>

<mosaic_0001>
module attributes {stable_mosaic.version = 11 : i64} {
  func.func @exportable_model_kernel(%arg0: i32, %arg1: memref<512x36xf32, #tpu.memory_space<vmem>>, %arg2: memref<36x32xf32, #tpu.memory_space<vmem>>, %arg3: memref<1x32xf32, #tpu.memory_space<vmem>>, %arg4: memref<2x512xf32, #tpu.memory_space<vmem>>, %arg5: memref<32x8xf32, #tpu.memory_space<vmem>>, %arg6: memref<1x8xf32, #tpu.memory_space<vmem>>, %arg7: memref<2x8xf32, #tpu.memory_space<vmem>>, %arg8: memref<2x32xf32, #tpu.memory_space<vmem>>) attributes {dimension_semantics = [#tpu.dimension_semantics<arbitrary>], iteration_bounds = array<i64: 1>, scalar_prefetch = 0 : i64, scratch_operands = 0 : i64, tpu.core_type = #tpu.core_type<tc>, window_params = [{pipeline_mode = #tpu.pipeline_mode<synchronous>, transform_indices = @transform_0, window_bounds = array<i64: 512, 36>}, {pipeline_mode = #tpu.pipeline_mode<synchronous>, transform_indices = @transform_1, window_bounds = array<i64: 36, 32>}, {pipeline_mode = #tpu.pipeline_mode<synchronous>, transform_indices = @transform_2, window_bounds = array<i64: 1, 32>}, {pipeline_mode = #tpu.pipeline_mode<synchronous>, transform_indices = @transform_3, window_bounds = array<i64: 2, 512>}, {pipeline_mode = #tpu.pipeline_mode<synchronous>, transform_indices = @transform_4, window_bounds = array<i64: 32, 8>}, {pipeline_mode = #tpu.pipeline_mode<synchronous>, transform_indices = @transform_5, window_bounds = array<i64: 1, 8>}, {pipeline_mode = #tpu.pipeline_mode<synchronous>, transform_indices = @transform_6, window_bounds = array<i64: 2, 8>}, {pipeline_mode = #tpu.pipeline_mode<synchronous>, transform_indices = @transform_7, window_bounds = array<i64: 2, 32>}]} {
    %c0 = arith.constant 0 : index
    %c0_0 = arith.constant 0 : index
    %0 = vector.load %arg1[%c0, %c0_0] : memref<512x36xf32, #tpu.memory_space<vmem>>, vector<512x36xf32>
    %c0_1 = arith.constant 0 : index
    %c0_2 = arith.constant 0 : index
    %1 = vector.load %arg2[%c0_1, %c0_2] : memref<36x32xf32, #tpu.memory_space<vmem>>, vector<36x32xf32>
    %cst = arith.constant dense<0.000000e+00> : vector<512x32xf32>
    %2 = tpu.matmul %0, %1, %cst {dimension_numbers = #tpu.dot_dimension_numbers<[1], [0], [0], [1], [0, 0, 1, 1], [], []>} : vector<512x36xf32>, vector<36x32xf32>, vector<512x32xf32> -> vector<512x32xf32>
    %c0_3 = arith.constant 0 : index
    %c0_4 = arith.constant 0 : index
    %3 = vector.load %arg3[%c0_3, %c0_4] : memref<1x32xf32, #tpu.memory_space<vmem>>, vector<1x32xf32>
    %4 = vector.broadcast %3 : vector<1x32xf32> to vector<512x32xf32>
    %5 = arith.addf %2, %4 : vector<512x32xf32>
    %cst_5 = arith.constant 0.000000e+00 : f32
    %6 = vector.broadcast %cst_5 : f32 to vector<512x32xf32>
    %7 = arith.maximumf %5, %6 : vector<512x32xf32>
    %c0_6 = arith.constant 0 : index
    %c0_7 = arith.constant 0 : index
    %8 = vector.load %arg4[%c0_6, %c0_7] : memref<2x512xf32, #tpu.memory_space<vmem>>, vector<2x512xf32>
    %cst_8 = arith.constant dense<0.000000e+00> : vector<2x32xf32>
    %9 = tpu.matmul %8, %7, %cst_8 {dimension_numbers = #tpu.dot_dimension_numbers<[1], [0], [0], [1], [0, 0, 1, 1], [], []>} : vector<2x512xf32>, vector<512x32xf32>, vector<2x32xf32> -> vector<2x32xf32>
    %c0_9 = arith.constant 0 : index
    %c0_10 = arith.constant 0 : index
    %10 = vector.load %arg8[%c0_9, %c0_10] : memref<2x32xf32, #tpu.memory_space<vmem>>, vector<2x32xf32>
    tpu.vector_store %arg8[%c0_9, %c0_10], %9 {strides = array<i32>} : memref<2x32xf32, #tpu.memory_space<vmem>>, vector<2x32xf32>,
    %c0_11 = arith.constant 0 : index
    %c0_12 = arith.constant 0 : index
    %11 = vector.load %arg5[%c0_11, %c0_12] : memref<32x8xf32, #tpu.memory_space<vmem>>, vector<32x8xf32>
    %cst_13 = arith.constant dense<0.000000e+00> : vector<2x8xf32>
    %12 = tpu.matmul %9, %11, %cst_13 {dimension_numbers = #tpu.dot_dimension_numbers<[1], [0], [0], [1], [0, 0, 1, 1], [], []>} : vector<2x32xf32>, vector<32x8xf32>, vector<2x8xf32> -> vector<2x8xf32>
    %c0_14 = arith.constant 0 : index
    %c0_15 = arith.constant 0 : index
    %13 = vector.load %arg6[%c0_14, %c0_15] : memref<1x8xf32, #tpu.memory_space<vmem>>, vector<1x8xf32>
    %14 = vector.broadcast %13 : vector<1x8xf32> to vector<2x8xf32>
    %15 = arith.addf %12, %14 : vector<2x8xf32>
    %c0_16 = arith.constant 0 : index
    %c0_17 = arith.constant 0 : index
    %16 = vector.load %arg7[%c0_16, %c0_17] : memref<2x8xf32, #tpu.memory_space<vmem>>, vector<2x8xf32>
    tpu.vector_store %arg7[%c0_16, %c0_17], %15 {strides = array<i32>} : memref<2x8xf32, #tpu.memory_space<vmem>>, vector<2x8xf32>,
    return
  }
  func.func @transform_0(%arg0: i32) -> (i32, i32) {
    %c0_i32 = arith.constant 0 : i32
    %c0_i32_0 = arith.constant 0 : i32
    %c0_i32_1 = arith.constant 0 : i32
    return %c0_i32, %c0_i32_0 : i32, i32
  }
  func.func @transform_1(%arg0: i32) -> (i32, i32) {
    %c0_i32 = arith.constant 0 : i32
    %c0_i32_0 = arith.constant 0 : i32
    %c0_i32_1 = arith.constant 0 : i32
    return %c0_i32, %c0_i32_0 : i32, i32
  }
  func.func @transform_2(%arg0: i32) -> (i32, i32) {
    %c0_i32 = arith.constant 0 : i32
    %c0_i32_0 = arith.constant 0 : i32
    %c0_i32_1 = arith.constant 0 : i32
    return %c0_i32, %c0_i32_0 : i32, i32
  }
  func.func @transform_3(%arg0: i32) -> (i32, i32) {
    %c0_i32 = arith.constant 0 : i32
    %c0_i32_0 = arith.constant 0 : i32
    %c0_i32_1 = arith.constant 0 : i32
    return %c0_i32, %c0_i32_0 : i32, i32
  }
  func.func @transform_4(%arg0: i32) -> (i32, i32) {
    %c0_i32 = arith.constant 0 : i32
    %c0_i32_0 = arith.constant 0 : i32
    %c0_i32_1 = arith.constant 0 : i32
    return %c0_i32, %c0_i32_0 : i32, i32
  }
  func.func @transform_5(%arg0: i32) -> (i32, i32) {
    %c0_i32 = arith.constant 0 : i32
    %c0_i32_0 = arith.constant 0 : i32
    %c0_i32_1 = arith.constant 0 : i32
    return %c0_i32, %c0_i32_0 : i32, i32
  }
  func.func @transform_6(%arg0: i32) -> (i32, i32) {
    %c0_i32 = arith.constant 0 : i32
    %c0_i32_0 = arith.constant 0 : i32
    %c0_i32_1 = arith.constant 0 : i32
    return %c0_i32, %c0_i32_0 : i32, i32
  }
  func.func @transform_7(%arg0: i32) -> (i32, i32) {
    %c0_i32 = arith.constant 0 : i32
    %c0_i32_0 = arith.constant 0 : i32
    %c0_i32_1 = arith.constant 0 : i32
    return %c0_i32, %c0_i32_0 : i32, i32
  }
}

</mosaic_0001>

<llo_original>
// kernel: tpu_custom_call.1
$region0: #{tpu_custom_call.1}
  #allocation0 [shape = 'u32[]', space=smem, size = 0x4, offset = 0x4, fixed_abs, tag = 'smem constant byte address 0x4 - core index']
  #allocation1 [shape = 'u32[144,128]{1,0:T(1,128)}', space=vmem, size = 0x12000, scoped, tag = 'internal scratch']
  %s0 = inlined_call_operand.vmem [shape: f32[512,36], index: 0, kind: input, shape index: {}]
  %s1 = inlined_call_operand.vmem [shape: f32[36,32], index: 1, kind: input, shape index: {}]
  %s2 = inlined_call_operand.vmem [shape: f32[1,32], index: 2, kind: input, shape index: {}]
  %s3 = inlined_call_operand.vmem [shape: f32[2,512], index: 3, kind: input, shape index: {}]
  %s4 = inlined_call_operand.vmem [shape: f32[32,8], index: 4, kind: input, shape index: {}]
  %s5 = inlined_call_operand.vmem [shape: f32[1,8], index: 5, kind: input, shape index: {}]
  %s6 = inlined_call_operand.hbm [shape: f32[2,8], index: 6, kind: output, shape index: {0}]
  %s7 = inlined_call_operand.hbm [shape: f32[2,32], index: 7, kind: output, shape index: {1}]
  %8 = xla_tuple %s6, %s7
  %s9 = sld [smem:[#allocation0]]
  $region42: #{tpu_custom_call.1} parent=0
    _
  %s11 = ssub.s32 1, %s9
  %s12 = scalar_select 0, %s11, %s9
  $region1: #{tpu_custom_call.1} parent=0
    #allocation2 [shape = 'u8[1024]{0}', space=vmem, size = 0x400, scoped, tag = 'output window, operand 0, single buffered']
    #allocation3 [shape = 's32[1]{0}', space=sflag, size = 0x4, scoped, tag = 'scoped memory for tpu_custom_call.1']
    #allocation4 [shape = 'u8[1024]{0}', space=vmem, size = 0x400, scoped, tag = 'output window, operand 1, single buffered']
    #allocation5 [shape = 's32[1]{0}', space=sflag, size = 0x4, scoped, tag = 'scoped memory for tpu_custom_call.1']
    %13 = vsyncpa [#allocation3], 0
    %14 = vsyncpa [#allocation5], 0
    // Predicated region
    $region2: #{tpu_custom_call.1} parent=1 // pred_check
      _
    $region3: #{tpu_custom_call.1} parent=1 // pred_check_branch
      %16 = sbr.rel (0) target = $region5
    $region4: #{tpu_custom_call.1} parent=1 // pred_region
      _
    $region5: #{tpu_custom_call.1} parent=1 // pred_fallthru
      _
    // Predicated region
    $region6: #{tpu_custom_call.1} parent=1 // pred_check
      _
    $region7: #{tpu_custom_call.1} parent=1 // pred_check_branch
      %18 = sbr.rel (0) target = $region9
    $region8: #{tpu_custom_call.1} parent=1 // pred_region
      _
    $region9: #{tpu_custom_call.1} parent=1 // pred_fallthru
      _
    // Predicated region
    $region10: #{tpu_custom_call.1} parent=1 // pred_check
      _
    $region11: #{tpu_custom_call.1} parent=1 // pred_check_branch
      %20 = sbr.rel (0) target = $region13
    $region12: #{tpu_custom_call.1} parent=1 // pred_region
      _
    $region13: #{tpu_custom_call.1} parent=1 // pred_fallthru
      _
    // Predicated region
    $region14: #{tpu_custom_call.1} parent=1 // pred_check
      _
    $region15: #{tpu_custom_call.1} parent=1 // pred_check_branch
      %22 = sbr.rel (0) target = $region17
    $region16: #{tpu_custom_call.1} parent=1 // pred_region
      _
    $region17: #{tpu_custom_call.1} parent=1 // pred_fallthru
      _
    // Predicated region
    $region18: #{tpu_custom_call.1} parent=1 // pred_check
      _
    $region19: #{tpu_custom_call.1} parent=1 // pred_check_branch
      %24 = sbr.rel (0) target = $region21
    $region20: #{tpu_custom_call.1} parent=1 // pred_region
      _
    $region21: #{tpu_custom_call.1} parent=1 // pred_fallthru
      _
    // Predicated region
    $region22: #{tpu_custom_call.1} parent=1 // pred_check
      _
    $region23: #{tpu_custom_call.1} parent=1 // pred_check_branch
      %26 = sbr.rel (0) target = $region25
    $region24: #{tpu_custom_call.1} parent=1 // pred_region
      _
    $region25: #{tpu_custom_call.1} parent=1 // pred_fallthru
      _
    %v27 = vld [vmem:[%s0] sm:$0xff]
    %v28 = vld [vmem:[%s0 + $0x8] sm:$0xff]
    %v29 = vld [vmem:[%s0 + $0x10] sm:$0xff]
    %v30 = vld [vmem:[%s0 + $0x18] sm:$0xff]
    %v31 = vld [vmem:[%s0 + $0x20] sm:$0xff]
    %v32 = vld [vmem:[%s0 + $0x28] sm:$0xff]
    %v33 = vld [vmem:[%s0 + $0x30] sm:$0xff]
    %v34 = vld [vmem:[%s0 + $0x38] sm:$0xff]
    %v35 = vld [vmem:[%s0 + $0x40] sm:$0xff]
    %v36 = vld [vmem:[%s0 + $0x48] sm:$0xff]
    %v37 = vld [vmem:[%s0 + $0x50] sm:$0xff]
    %v38 = vld [vmem:[%s0 + $0x58] sm:$0xff]
    %v39 = vld [vmem:[%s0 + $0x60] sm:$0xff]
    %v40 = vld [vmem:[%s0 + $0x68] sm:$0xff]
    %v41 = vld [vmem:[%s0 + $0x70] sm:$0xff]
    %v42 = vld [vmem:[%s0 + $0x78] sm:$0xff]
    %v43 = vld [vmem:[%s0 + $0x80] sm:$0xff]
    %v44 = vld [vmem:[%s0 + $0x88] sm:$0xff]
    %v45 = vld [vmem:[%s0 + $0x90] sm:$0xff]
    %v46 = vld [vmem:[%s0 + $0x98] sm:$0xff]
    %v47 = vld [vmem:[%s0 + $0xa0] sm:$0xff]
    %v48 = vld [vmem:[%s0 + $0xa8] sm:$0xff]
    %v49 = vld [vmem:[%s0 + $0xb0] sm:$0xff]
    %v50 = vld [vmem:[%s0 + $0xb8] sm:$0xff]
    %v51 = vld [vmem:[%s0 + $0xc0] sm:$0xff]
    %v52 = vld [vmem:[%s0 + $0xc8] sm:$0xff]
    %v53 = vld [vmem:[%s0 + $0xd0] sm:$0xff]
    %v54 = vld [vmem:[%s0 + $0xd8] sm:$0xff]
    %v55 = vld [vmem:[%s0 + $0xe0] sm:$0xff]
    %v56 = vld [vmem:[%s0 + $0xe8] sm:$0xff]
    %v57 = vld [vmem:[%s0 + $0xf0] sm:$0xff]
    %v58 = vld [vmem:[%s0 + $0xf8] sm:$0xff]
    %v59 = vld [vmem:[%s0 + $0x100] sm:$0xff]
    %v60 = vld [vmem:[%s0 + $0x108] sm:$0xff]
    %v61 = vld [vmem:[%s0 + $0x110] sm:$0xff]
    %v62 = vld [vmem:[%s0 + $0x118] sm:$0xff]
    %v63 = vld [vmem:[%s0 + $0x120] sm:$0xff]
    %v64 = vld [vmem:[%s0 + $0x128] sm:$0xff]
    %v65 = vld [vmem:[%s0 + $0x130] sm:$0xff]
    %v66 = vld [vmem:[%s0 + $0x138] sm:$0xff]
    %v67 = vld [vmem:[%s0 + $0x140] sm:$0xff]
    %v68 = vld [vmem:[%s0 + $0x148] sm:$0xff]
    %v69 = vld [vmem:[%s0 + $0x150] sm:$0xff]
    %v70 = vld [vmem:[%s0 + $0x158] sm:$0xff]
    %v71 = vld [vmem:[%s0 + $0x160] sm:$0xff]
    %v72 = vld [vmem:[%s0 + $0x168] sm:$0xff]
    %v73 = vld [vmem:[%s0 + $0x170] sm:$0xff]
    %v74 = vld [vmem:[%s0 + $0x178] sm:$0xff]
    %v75 = vld [vmem:[%s0 + $0x180] sm:$0xff]
    %v76 = vld [vmem:[%s0 + $0x188] sm:$0xff]
    %v77 = vld [vmem:[%s0 + $0x190] sm:$0xff]
    %v78 = vld [vmem:[%s0 + $0x198] sm:$0xff]
    %v79 = vld [vmem:[%s0 + $0x1a0] sm:$0xff]
    %v80 = vld [vmem:[%s0 + $0x1a8] sm:$0xff]
    %v81 = vld [vmem:[%s0 + $0x1b0] sm:$0xff]
    %v82 = vld [vmem:[%s0 + $0x1b8] sm:$0xff]
    %v83 = vld [vmem:[%s0 + $0x1c0] sm:$0xff]
    %v84 = vld [vmem:[%s0 + $0x1c8] sm:$0xff]
    %v85 = vld [vmem:[%s0 + $0x1d0] sm:$0xff]
    %v86 = vld [vmem:[%s0 + $0x1d8] sm:$0xff]
    %v87 = vld [vmem:[%s0 + $0x1e0] sm:$0xff]
    %v88 = vld [vmem:[%s0 + $0x1e8] sm:$0xff]
    %v89 = vld [vmem:[%s0 + $0x1f0] sm:$0xff]
    %v90 = vld [vmem:[%s0 + $0x1f8] sm:$0xff]
    %v91 = vld [vmem:[%s1] sm:$0xff]
    %v92 = vld [vmem:[%s1 + $0x8] sm:$0xff]
    %v93 = vld [vmem:[%s1 + $0x10] sm:$0xff]
    %v94 = vld [vmem:[%s1 + $0x18] sm:$0xff]
    %v95 = vld [vmem:[%s1 + $0x20] sm:$0xf]
    %v96 = vld [vmem:[%s2] sm:$0x1]
    %v98 = vlaneseq
    %v99 = vshrl.u32 %v98, 7
    %v100 = vsub.s32 0, %v99
    %v101 = vrot.slane %v96, %v100
    %vm103 = vcmask 293888
    %v105 = vsel %vm103, %v27, 0
    %v108 = vsel %vm103, %v28, 0
    %v111 = vsel %vm103, %v29, 0
    %v114 = vsel %vm103, %v30, 0
    %v117 = vsel %vm103, %v31, 0
    %v120 = vsel %vm103, %v32, 0
    %v123 = vsel %vm103, %v33, 0
    %v126 = vsel %vm103, %v34, 0
    %v129 = vsel %vm103, %v35, 0
    %v132 = vsel %vm103, %v36, 0
    %v135 = vsel %vm103, %v37, 0
    %v138 = vsel %vm103, %v38, 0
    %v141 = vsel %vm103, %v39, 0
    %v144 = vsel %vm103, %v40, 0
    %v147 = vsel %vm103, %v41, 0
    %v150 = vsel %vm103, %v42, 0
    %v153 = vsel %vm103, %v43, 0
    %v156 = vsel %vm103, %v44, 0
    %v159 = vsel %vm103, %v45, 0
    %v162 = vsel %vm103, %v46, 0
    %v165 = vsel %vm103, %v47, 0
    %v168 = vsel %vm103, %v48, 0
    %v171 = vsel %vm103, %v49, 0
    %v174 = vsel %vm103, %v50, 0
    %v177 = vsel %vm103, %v51, 0
    %v180 = vsel %vm103, %v52, 0
    %v183 = vsel %vm103, %v53, 0
    %v186 = vsel %vm103, %v54, 0
    %v189 = vsel %vm103, %v55, 0
    %v192 = vsel %vm103, %v56, 0
    %v195 = vsel %vm103, %v57, 0
    %v198 = vsel %vm103, %v58, 0
    %v201 = vsel %vm103, %v59, 0
    %v204 = vsel %vm103, %v60, 0
    %v207 = vsel %vm103, %v61, 0
    %v210 = vsel %vm103, %v62, 0
    %v213 = vsel %vm103, %v63, 0
    %v216 = vsel %vm103, %v64, 0
    %v219 = vsel %vm103, %v65, 0
    %v222 = vsel %vm103, %v66, 0
    %v225 = vsel %vm103, %v67, 0
    %v228 = vsel %vm103, %v68, 0
    %v231 = vsel %vm103, %v69, 0
    %v234 = vsel %vm103, %v70, 0
    %v237 = vsel %vm103, %v71, 0
    %v240 = vsel %vm103, %v72, 0
    %v243 = vsel %vm103, %v73, 0
    %v246 = vsel %vm103, %v74, 0
    %v249 = vsel %vm103, %v75, 0
    %v252 = vsel %vm103, %v76, 0
    %v255 = vsel %vm103, %v77, 0
    %v258 = vsel %vm103, %v78, 0
    %v261 = vsel %vm103, %v79, 0
    %v264 = vsel %vm103, %v80, 0
    %v267 = vsel %vm103, %v81, 0
    %v270 = vsel %vm103, %v82, 0
    %v273 = vsel %vm103, %v83, 0
    %v276 = vsel %vm103, %v84, 0
    %v279 = vsel %vm103, %v85, 0
    %v282 = vsel %vm103, %v86, 0
    %v285 = vsel %vm103, %v87, 0
    %v288 = vsel %vm103, %v88, 0
    %v291 = vsel %vm103, %v89, 0
    %v294 = vsel %vm103, %v90, 0
    %vm296 = vcmask 1043456
    %v298 = vsel %vm296, %v95, 0
    %300 = vmatprep.subr.mxu0 0.0
    %301 = vmatpush1.msra.mxu0 0.0
    %302 = vmatprep.subr.mxu0 0.0
    %303 = vmatpush1.msra.mxu0 0.0
    %304 = vmatprep.subr.mxu0 0.0
    %305 = vmatpush1.msra.mxu0 0.0
    %306 = vmatprep.subr.mxu0 0.0
    %307 = vmatpush1.msra.mxu0 0.0
    %308 = vmatprep.subr.mxu0 0.0
    %309 = vmatpush1.msra.mxu0 0.0
    %310 = vmatprep.subr.mxu0 0.0
    %311 = vmatpush1.msra.mxu0 0.0
    %312 = vmatprep.subr.mxu0 0.0
    %313 = vmatpush1.msra.mxu0 0.0
    %314 = vmatprep.subr.mxu0 0.0
    %315 = vmatpush1.msra.mxu0 0.0
    %316 = vmatprep.subr.mxu0 0.0
    %317 = vmatpush1.msra.mxu0 0.0
    %318 = vmatprep.subr.mxu0 0.0
    %319 = vmatpush1.msra.mxu0 0.0
    %320 = vmatprep.subr.mxu0 0.0
    %321 = vmatpush1.msra.mxu0 0.0
    %322 = vmatprep.subr.mxu0 0.0
    %323 = vmatpush1.msra.mxu0 %v298
    %324 = vmatprep.subr.mxu0 0.0
    %325 = vmatpush1.msra.mxu0 %v94
    %326 = vmatprep.subr.mxu0 0.0
    %327 = vmatpush1.msra.mxu0 %v93
    %328 = vmatprep.subr.mxu0 0.0
    %329 = vmatpush1.msra.mxu0 %v92
    %330 = vmatprep.subr.mxu0 0.0
    %331 = vmatpush1.msra.mxu0 %v91
    %332 = vmatprep.subr.mxu0 0.0
    %333 = vmatpush2.msra.mxu0 0.0
    %334 = vmatprep.subr.mxu0 0.0
    %335 = vmatpush2.msra.mxu0 0.0
    %336 = vmatprep.subr.mxu0 0.0
    %337 = vmatpush2.msra.mxu0 0.0
    %338 = vmatprep.subr.mxu0 0.0
    %339 = vmatpush2.msra.mxu0 0.0
    %340 = vmatprep.subr.mxu0 0.0
    %341 = vmatpush2.msra.mxu0 0.0
    %342 = vmatprep.subr.mxu0 0.0
    %343 = vmatpush2.msra.mxu0 0.0
    %344 = vmatprep.subr.mxu0 0.0
    %345 = vmatpush2.msra.mxu0 0.0
    %346 = vmatprep.subr.mxu0 0.0
    %347 = vmatpush2.msra.mxu0 0.0
    %348 = vmatprep.subr.mxu0 0.0
    %349 = vmatpush2.msra.mxu0 0.0
    %350 = vmatprep.subr.mxu0 0.0
    %351 = vmatpush2.msra.mxu0 0.0
    %352 = vmatprep.subr.mxu0 0.0
    %353 = vmatpush2.msra.mxu0 0.0
    %354 = vmatprep.subr.mxu0 0.0
    %355 = vmatpush2.msra.mxu0 0.0
    %356 = vmatprep.subr.mxu0 0.0
    %357 = vmatpush2.msra.mxu0 0.0
    %358 = vmatprep.subr.mxu0 0.0
    %359 = vmatpush2.msra.mxu0 0.0
    %360 = vmatprep.subr.mxu0 0.0
    %361 = vmatpush2.msra.mxu0 0.0
    %362 = vmatprep.subr.mxu0 0.0
    %363 = vmatpush2.msra.mxu0 0.0
    %364 = vmatprep.mubr.f32.mxu0 0.0
    %365 = vmatmul.mubr.f32.gmra.mxu0 %v105
    %v366 = vpop.f32.mrf.mxu0
    %v367 = vadd.f32 %v101, %v366
    %v368 = vpop.f32.mrf.mxu0
    %369 = vmatprep.mubr.f32.mxu0 0.0
    %370 = vmatmul.mubr.f32.gmra.mxu0 %v108
    %v371 = vpop.f32.mrf.mxu0
    %v372 = vadd.f32 %v101, %v371
    %v373 = vpop.f32.mrf.mxu0
    %374 = vmatprep.mubr.f32.mxu0 0.0
    %375 = vmatmul.mubr.f32.gmra.mxu0 %v111
    %v376 = vpop.f32.mrf.mxu0
    %v377 = vadd.f32 %v101, %v376
    %v378 = vpop.f32.mrf.mxu0
    %379 = vmatprep.mubr.f32.mxu0 0.0
    %380 = vmatmul.mubr.f32.gmra.mxu0 %v114
    %v381 = vpop.f32.mrf.mxu0
    %v382 = vadd.f32 %v101, %v381
    %v383 = vpop.f32.mrf.mxu0
    %384 = vmatprep.mubr.f32.mxu0 0.0
    %385 = vmatmul.mubr.f32.gmra.mxu0 %v117
    %v386 = vpop.f32.mrf.mxu0
    %v387 = vadd.f32 %v101, %v386
    %v388 = vpop.f32.mrf.mxu0
    %389 = vmatprep.mubr.f32.mxu0 0.0
    %390 = vmatmul.mubr.f32.gmra.mxu0 %v120
    %v391 = vpop.f32.mrf.mxu0
    %v392 = vadd.f32 %v101, %v391
    %v393 = vpop.f32.mrf.mxu0
    %394 = vmatprep.mubr.f32.mxu0 0.0
    %395 = vmatmul.mubr.f32.gmra.mxu0 %v123
    %v396 = vpop.f32.mrf.mxu0
    %v397 = vadd.f32 %v101, %v396
    %v398 = vpop.f32.mrf.mxu0
    %399 = vmatprep.mubr.f32.mxu0 0.0
    %400 = vmatmul.mubr.f32.gmra.mxu0 %v126
    %v401 = vpop.f32.mrf.mxu0
    %v402 = vadd.f32 %v101, %v401
    %v403 = vpop.f32.mrf.mxu0
    %404 = vmatprep.mubr.f32.mxu0 0.0
    %405 = vmatmul.mubr.f32.gmra.mxu0 %v129
    %v406 = vpop.f32.mrf.mxu0
    %v407 = vadd.f32 %v101, %v406
    %v408 = vpop.f32.mrf.mxu0
    %409 = vmatprep.mubr.f32.mxu0 0.0
    %410 = vmatmul.mubr.f32.gmra.mxu0 %v132
    %v411 = vpop.f32.mrf.mxu0
    %v412 = vadd.f32 %v101, %v411
    %v413 = vpop.f32.mrf.mxu0
    %414 = vmatprep.mubr.f32.mxu0 0.0
    %415 = vmatmul.mubr.f32.gmra.mxu0 %v135
    %v416 = vpop.f32.mrf.mxu0
    %v417 = vadd.f32 %v101, %v416
    %v418 = vpop.f32.mrf.mxu0
    %419 = vmatprep.mubr.f32.mxu0 0.0
    %420 = vmatmul.mubr.f32.gmra.mxu0 %v138
    %v421 = vpop.f32.mrf.mxu0
    %v422 = vadd.f32 %v101, %v421
    %v423 = vpop.f32.mrf.mxu0
    %424 = vmatprep.mubr.f32.mxu0 0.0
    %425 = vmatmul.mubr.f32.gmra.mxu0 %v141
    %v426 = vpop.f32.mrf.mxu0
    %v427 = vadd.f32 %v101, %v426
    %v428 = vpop.f32.mrf.mxu0
    %429 = vmatprep.mubr.f32.mxu0 0.0
    %430 = vmatmul.mubr.f32.gmra.mxu0 %v144
    %v431 = vpop.f32.mrf.mxu0
    %v432 = vadd.f32 %v101, %v431
    %v433 = vpop.f32.mrf.mxu0
    %434 = vmatprep.mubr.f32.mxu0 0.0
    %435 = vmatmul.mubr.f32.gmra.mxu0 %v147
    %v436 = vpop.f32.mrf.mxu0
    %v437 = vadd.f32 %v101, %v436
    %v438 = vpop.f32.mrf.mxu0
    %439 = vmatprep.mubr.f32.mxu0 0.0
    %440 = vmatmul.mubr.f32.gmra.mxu0 %v150
    %v441 = vpop.f32.mrf.mxu0
    %v442 = vadd.f32 %v101, %v441
    %v443 = vpop.f32.mrf.mxu0
    %444 = vmatprep.mubr.f32.mxu0 0.0
    %445 = vmatmul.mubr.f32.gmra.mxu0 %v153
    %v446 = vpop.f32.mrf.mxu0
    %v447 = vadd.f32 %v101, %v446
    %v448 = vpop.f32.mrf.mxu0
    %449 = vmatprep.mubr.f32.mxu0 0.0
    %450 = vmatmul.mubr.f32.gmra.mxu0 %v156
    %v451 = vpop.f32.mrf.mxu0
    %v452 = vadd.f32 %v101, %v451
    %v453 = vpop.f32.mrf.mxu0
    %454 = vmatprep.mubr.f32.mxu0 0.0
    %455 = vmatmul.mubr.f32.gmra.mxu0 %v159
    %v456 = vpop.f32.mrf.mxu0
    %v457 = vadd.f32 %v101, %v456
    %v458 = vpop.f32.mrf.mxu0
    %459 = vmatprep.mubr.f32.mxu0 0.0
    %460 = vmatmul.mubr.f32.gmra.mxu0 %v162
    %v461 = vpop.f32.mrf.mxu0
    %v462 = vadd.f32 %v101, %v461
    %v463 = vpop.f32.mrf.mxu0
    %464 = vmatprep.mubr.f32.mxu0 0.0
    %465 = vmatmul.mubr.f32.gmra.mxu0 %v165
    %v466 = vpop.f32.mrf.mxu0
    %v467 = vadd.f32 %v101, %v466
    %v468 = vpop.f32.mrf.mxu0
    %469 = vmatprep.mubr.f32.mxu0 0.0
    %470 = vmatmul.mubr.f32.gmra.mxu0 %v168
    %v471 = vpop.f32.mrf.mxu0
    %v472 = vadd.f32 %v101, %v471
    %v473 = vpop.f32.mrf.mxu0
    %474 = vmatprep.mubr.f32.mxu0 0.0
    %475 = vmatmul.mubr.f32.gmra.mxu0 %v171
    %v476 = vpop.f32.mrf.mxu0
    %v477 = vadd.f32 %v101, %v476
    %v478 = vpop.f32.mrf.mxu0
    %479 = vmatprep.mubr.f32.mxu0 0.0
    %480 = vmatmul.mubr.f32.gmra.mxu0 %v174
    %v481 = vpop.f32.mrf.mxu0
    %v482 = vadd.f32 %v101, %v481
    %v483 = vpop.f32.mrf.mxu0
    %484 = vmatprep.mubr.f32.mxu0 0.0
    %485 = vmatmul.mubr.f32.gmra.mxu0 %v177
    %v486 = vpop.f32.mrf.mxu0
    %v487 = vadd.f32 %v101, %v486
    %v488 = vpop.f32.mrf.mxu0
    %489 = vmatprep.mubr.f32.mxu0 0.0
    %490 = vmatmul.mubr.f32.gmra.mxu0 %v180
    %v491 = vpop.f32.mrf.mxu0
    %v492 = vadd.f32 %v101, %v491
    %v493 = vpop.f32.mrf.mxu0
    %494 = vmatprep.mubr.f32.mxu0 0.0
    %495 = vmatmul.mubr.f32.gmra.mxu0 %v183
    %v496 = vpop.f32.mrf.mxu0
    %v497 = vadd.f32 %v101, %v496
    %v498 = vpop.f32.mrf.mxu0
    %499 = vmatprep.mubr.f32.mxu0 0.0
    %500 = vmatmul.mubr.f32.gmra.mxu0 %v186
    %v501 = vpop.f32.mrf.mxu0
    %v502 = vadd.f32 %v101, %v501
    %v503 = vpop.f32.mrf.mxu0
    %504 = vmatprep.mubr.f32.mxu0 0.0
    %505 = vmatmul.mubr.f32.gmra.mxu0 %v189
    %v506 = vpop.f32.mrf.mxu0
    %v507 = vadd.f32 %v101, %v506
    %v508 = vpop.f32.mrf.mxu0
    %509 = vmatprep.mubr.f32.mxu0 0.0
    %510 = vmatmul.mubr.f32.gmra.mxu0 %v192
    %v511 = vpop.f32.mrf.mxu0
    %v512 = vadd.f32 %v101, %v511
    %v513 = vpop.f32.mrf.mxu0
    %514 = vmatprep.mubr.f32.mxu0 0.0
    %515 = vmatmul.mubr.f32.gmra.mxu0 %v195
    %v516 = vpop.f32.mrf.mxu0
    %v517 = vadd.f32 %v101, %v516
    %v518 = vpop.f32.mrf.mxu0
    %519 = vmatprep.mubr.f32.mxu0 0.0
    %520 = vmatmul.mubr.f32.gmra.mxu0 %v198
    %v521 = vpop.f32.mrf.mxu0
    %v522 = vadd.f32 %v101, %v521
    %v523 = vpop.f32.mrf.mxu0
    %524 = vmatprep.mubr.f32.mxu0 0.0
    %525 = vmatmul.mubr.f32.gmra.mxu0 %v201
    %v526 = vpop.f32.mrf.mxu0
    %v527 = vadd.f32 %v101, %v526
    %v528 = vpop.f32.mrf.mxu0
    %529 = vmatprep.mubr.f32.mxu0 0.0
    %530 = vmatmul.mubr.f32.gmra.mxu0 %v204
    %v531 = vpop.f32.mrf.mxu0
    %v532 = vadd.f32 %v101, %v531
    %v533 = vpop.f32.mrf.mxu0
    %534 = vmatprep.mubr.f32.mxu0 0.0
    %535 = vmatmul.mubr.f32.gmra.mxu0 %v207
    %v536 = vpop.f32.mrf.mxu0
    %v537 = vadd.f32 %v101, %v536
    %v538 = vpop.f32.mrf.mxu0
    %539 = vmatprep.mubr.f32.mxu0 0.0
    %540 = vmatmul.mubr.f32.gmra.mxu0 %v210
    %v541 = vpop.f32.mrf.mxu0
    %v542 = vadd.f32 %v101, %v541
    %v543 = vpop.f32.mrf.mxu0
    %544 = vmatprep.mubr.f32.mxu0 0.0
    %545 = vmatmul.mubr.f32.gmra.mxu0 %v213
    %v546 = vpop.f32.mrf.mxu0
    %v547 = vadd.f32 %v101, %v546
    %v548 = vpop.f32.mrf.mxu0
    %549 = vmatprep.mubr.f32.mxu0 0.0
    %550 = vmatmul.mubr.f32.gmra.mxu0 %v216
    %v551 = vpop.f32.mrf.mxu0
    %v552 = vadd.f32 %v101, %v551
    %v553 = vpop.f32.mrf.mxu0
    %554 = vmatprep.mubr.f32.mxu0 0.0
    %555 = vmatmul.mubr.f32.gmra.mxu0 %v219
    %v556 = vpop.f32.mrf.mxu0
    %v557 = vadd.f32 %v101, %v556
    %v558 = vpop.f32.mrf.mxu0
    %559 = vmatprep.mubr.f32.mxu0 0.0
    %560 = vmatmul.mubr.f32.gmra.mxu0 %v222
    %v561 = vpop.f32.mrf.mxu0
    %v562 = vadd.f32 %v101, %v561
    %v563 = vpop.f32.mrf.mxu0
    %564 = vmatprep.mubr.f32.mxu0 0.0
    %565 = vmatmul.mubr.f32.gmra.mxu0 %v225
    %v566 = vpop.f32.mrf.mxu0
    %v567 = vadd.f32 %v101, %v566
    %v568 = vpop.f32.mrf.mxu0
    %569 = vmatprep.mubr.f32.mxu0 0.0
    %570 = vmatmul.mubr.f32.gmra.mxu0 %v228
    %v571 = vpop.f32.mrf.mxu0
    %v572 = vadd.f32 %v101, %v571
    %v573 = vpop.f32.mrf.mxu0
    %574 = vmatprep.mubr.f32.mxu0 0.0
    %575 = vmatmul.mubr.f32.gmra.mxu0 %v231
    %v576 = vpop.f32.mrf.mxu0
    %v577 = vadd.f32 %v101, %v576
    %v578 = vpop.f32.mrf.mxu0
    %579 = vmatprep.mubr.f32.mxu0 0.0
    %580 = vmatmul.mubr.f32.gmra.mxu0 %v234
    %v581 = vpop.f32.mrf.mxu0
    %v582 = vadd.f32 %v101, %v581
    %v583 = vpop.f32.mrf.mxu0
    %584 = vmatprep.mubr.f32.mxu0 0.0
    %585 = vmatmul.mubr.f32.gmra.mxu0 %v237
    %v586 = vpop.f32.mrf.mxu0
    %v587 = vadd.f32 %v101, %v586
    %v588 = vpop.f32.mrf.mxu0
    %589 = vmatprep.mubr.f32.mxu0 0.0
    %590 = vmatmul.mubr.f32.gmra.mxu0 %v240
    %v591 = vpop.f32.mrf.mxu0
    %v592 = vadd.f32 %v101, %v591
    %v593 = vpop.f32.mrf.mxu0
    %594 = vmatprep.mubr.f32.mxu0 0.0
    %595 = vmatmul.mubr.f32.gmra.mxu0 %v243
    %v596 = vpop.f32.mrf.mxu0
    %v597 = vadd.f32 %v101, %v596
    %v598 = vpop.f32.mrf.mxu0
    %599 = vmatprep.mubr.f32.mxu0 0.0
    %600 = vmatmul.mubr.f32.gmra.mxu0 %v246
    %v601 = vpop.f32.mrf.mxu0
    %v602 = vadd.f32 %v101, %v601
    %v603 = vpop.f32.mrf.mxu0
    %604 = vmatprep.mubr.f32.mxu0 0.0
    %605 = vmatmul.mubr.f32.gmra.mxu0 %v249
    %v606 = vpop.f32.mrf.mxu0
    %v607 = vadd.f32 %v101, %v606
    %v608 = vpop.f32.mrf.mxu0
    %609 = vmatprep.mubr.f32.mxu0 0.0
    %610 = vmatmul.mubr.f32.gmra.mxu0 %v252
    %v611 = vpop.f32.mrf.mxu0
    %v612 = vadd.f32 %v101, %v611
    %v613 = vpop.f32.mrf.mxu0
    %614 = vmatprep.mubr.f32.mxu0 0.0
    %615 = vmatmul.mubr.f32.gmra.mxu0 %v255
    %v616 = vpop.f32.mrf.mxu0
    %v617 = vadd.f32 %v101, %v616
    %v618 = vpop.f32.mrf.mxu0
    %619 = vmatprep.mubr.f32.mxu0 0.0
    %620 = vmatmul.mubr.f32.gmra.mxu0 %v258
    %v621 = vpop.f32.mrf.mxu0
    %v622 = vadd.f32 %v101, %v621
    %v623 = vpop.f32.mrf.mxu0
    %624 = vmatprep.mubr.f32.mxu0 0.0
    %625 = vmatmul.mubr.f32.gmra.mxu0 %v261
    %v626 = vpop.f32.mrf.mxu0
    %v627 = vadd.f32 %v101, %v626
    %v628 = vpop.f32.mrf.mxu0
    %629 = vmatprep.mubr.f32.mxu0 0.0
    %630 = vmatmul.mubr.f32.gmra.mxu0 %v264
    %v631 = vpop.f32.mrf.mxu0
    %v632 = vadd.f32 %v101, %v631
    %v633 = vpop.f32.mrf.mxu0
    %634 = vmatprep.mubr.f32.mxu0 0.0
    %635 = vmatmul.mubr.f32.gmra.mxu0 %v267
    %v636 = vpop.f32.mrf.mxu0
    %v637 = vadd.f32 %v101, %v636
    %v638 = vpop.f32.mrf.mxu0
    %639 = vmatprep.mubr.f32.mxu0 0.0
    %640 = vmatmul.mubr.f32.gmra.mxu0 %v270
    %v641 = vpop.f32.mrf.mxu0
    %v642 = vadd.f32 %v101, %v641
    %v643 = vpop.f32.mrf.mxu0
    %644 = vmatprep.mubr.f32.mxu0 0.0
    %645 = vmatmul.mubr.f32.gmra.mxu0 %v273
    %v646 = vpop.f32.mrf.mxu0
    %v647 = vadd.f32 %v101, %v646
    %v648 = vpop.f32.mrf.mxu0
    %649 = vmatprep.mubr.f32.mxu0 0.0
    %650 = vmatmul.mubr.f32.gmra.mxu0 %v276
    %v651 = vpop.f32.mrf.mxu0
    %v652 = vadd.f32 %v101, %v651
    %v653 = vpop.f32.mrf.mxu0
    %654 = vmatprep.mubr.f32.mxu0 0.0
    %655 = vmatmul.mubr.f32.gmra.mxu0 %v279
    %v656 = vpop.f32.mrf.mxu0
    %v657 = vadd.f32 %v101, %v656
    %v658 = vpop.f32.mrf.mxu0
    %659 = vmatprep.mubr.f32.mxu0 0.0
    %660 = vmatmul.mubr.f32.gmra.mxu0 %v282
    %v661 = vpop.f32.mrf.mxu0
    %v662 = vadd.f32 %v101, %v661
    %v663 = vpop.f32.mrf.mxu0
    %664 = vmatprep.mubr.f32.mxu0 0.0
    %665 = vmatmul.mubr.f32.gmra.mxu0 %v285
    %v666 = vpop.f32.mrf.mxu0
    %v667 = vadd.f32 %v101, %v666
    %v668 = vpop.f32.mrf.mxu0
    %669 = vmatprep.mubr.f32.mxu0 0.0
    %670 = vmatmul.mubr.f32.gmra.mxu0 %v288
    %v671 = vpop.f32.mrf.mxu0
    %v672 = vadd.f32 %v101, %v671
    %v673 = vpop.f32.mrf.mxu0
    %674 = vmatprep.mubr.f32.mxu0 0.0
    %675 = vmatmul.mubr.f32.gmra.mxu0 %v291
    %v676 = vpop.f32.mrf.mxu0
    %v677 = vadd.f32 %v101, %v676
    %v678 = vpop.f32.mrf.mxu0
    %679 = vmatprep.mubr.f32.mxu0 0.0
    %680 = vmatmul.mubr.f32.gmra.mxu0 %v294
    %v681 = vpop.f32.mrf.mxu0
    %v682 = vadd.f32 %v101, %v681
    %v683 = vpop.f32.mrf.mxu0
    %684 = vdwg.mxu0
    %v685 = vmax.f32 %v367, 0.0
    %v686 = vmax.f32 %v372, 0.0
    %v687 = vmax.f32 %v377, 0.0
    %v688 = vmax.f32 %v382, 0.0
    %v689 = vmax.f32 %v387, 0.0
    %v690 = vmax.f32 %v392, 0.0
    %v691 = vmax.f32 %v397, 0.0
    %v692 = vmax.f32 %v402, 0.0
    %v693 = vmax.f32 %v407, 0.0
    %v694 = vmax.f32 %v412, 0.0
    %v695 = vmax.f32 %v417, 0.0
    %v696 = vmax.f32 %v422, 0.0
    %v697 = vmax.f32 %v427, 0.0
    %v698 = vmax.f32 %v432, 0.0
    %v699 = vmax.f32 %v437, 0.0
    %v700 = vmax.f32 %v442, 0.0
    %v701 = vmax.f32 %v447, 0.0
    %v702 = vmax.f32 %v452, 0.0
    %v703 = vmax.f32 %v457, 0.0
    %v704 = vmax.f32 %v462, 0.0
    %v705 = vmax.f32 %v467, 0.0
    %v706 = vmax.f32 %v472, 0.0
    %v707 = vmax.f32 %v477, 0.0
    %v708 = vmax.f32 %v482, 0.0
    %v709 = vmax.f32 %v487, 0.0
    %v710 = vmax.f32 %v492, 0.0
    %v711 = vmax.f32 %v497, 0.0
    %v712 = vmax.f32 %v502, 0.0
    %v713 = vmax.f32 %v507, 0.0
    %v714 = vmax.f32 %v512, 0.0
    %v715 = vmax.f32 %v517, 0.0
    %v716 = vmax.f32 %v522, 0.0
    %v717 = vmax.f32 %v527, 0.0
    %v718 = vmax.f32 %v532, 0.0
    %v719 = vmax.f32 %v537, 0.0
    %v720 = vmax.f32 %v542, 0.0
    %v721 = vmax.f32 %v547, 0.0
    %v722 = vmax.f32 %v552, 0.0
    %v723 = vmax.f32 %v557, 0.0
    %v724 = vmax.f32 %v562, 0.0
    %v725 = vmax.f32 %v567, 0.0
    %v726 = vmax.f32 %v572, 0.0
    %v727 = vmax.f32 %v577, 0.0
    %v728 = vmax.f32 %v582, 0.0
    %v729 = vmax.f32 %v587, 0.0
    %v730 = vmax.f32 %v592, 0.0
    %v731 = vmax.f32 %v597, 0.0
    %v732 = vmax.f32 %v602, 0.0
    %v733 = vmax.f32 %v607, 0.0
    %v734 = vmax.f32 %v612, 0.0
    %v735 = vmax.f32 %v617, 0.0
    %v736 = vmax.f32 %v622, 0.0
    %v737 = vmax.f32 %v627, 0.0
    %v738 = vmax.f32 %v632, 0.0
    %v739 = vmax.f32 %v637, 0.0
    %v740 = vmax.f32 %v642, 0.0
    %v741 = vmax.f32 %v647, 0.0
    %v742 = vmax.f32 %v652, 0.0
    %v743 = vmax.f32 %v657, 0.0
    %v744 = vmax.f32 %v662, 0.0
    %v745 = vmax.f32 %v667, 0.0
    %v746 = vmax.f32 %v672, 0.0
    %v747 = vmax.f32 %v677, 0.0
    %v748 = vmax.f32 %v682, 0.0
    %v749 = vld [vmem:[%s3] sm:$0xff]
    %v751 = vcombine.high %v749, %v749
    %v753 = vunpack.c.l.s4 1983009808
    %v754 = vunpack.c.0.s8 %v753
    %v755 = vlaneseq
    %v756 = vshrl.u32 %v755, 7
    %v757 = vsub.s32 %v754, %v756
    %v758 = vrot.slane %v749, %v757
    %v760 = vunpack.c.l.s4 1983009808
    %v761 = vunpack.c.0.s8 %v760
    %v762 = vlaneseq
    %v763 = vshrl.u32 %v762, 7
    %v764 = vsub.s32 %v761, %v763
    %v765 = vrot.slane %v751, %v764
    %v766 = vcombine.high %v758, %v758
    %v767 = vcombine.high %v765, %v765
    %772 = vmatprep.subr.mxu0 0.0
    %773 = vmatpush1.msra.mxu0 %v700
    %774 = vmatprep.subr.mxu0 0.0
    %775 = vmatpush1.msra.mxu0 %v699
    %776 = vmatprep.subr.mxu0 0.0
    %777 = vmatpush1.msra.mxu0 %v698
    %778 = vmatprep.subr.mxu0 0.0
    %779 = vmatpush1.msra.mxu0 %v697
    %780 = vmatprep.subr.mxu0 0.0
    %781 = vmatpush1.msra.mxu0 %v696
    %782 = vmatprep.subr.mxu0 0.0
    %783 = vmatpush1.msra.mxu0 %v695
    %784 = vmatprep.subr.mxu0 0.0
    %785 = vmatpush1.msra.mxu0 %v694
    %786 = vmatprep.subr.mxu0 0.0
    %787 = vmatpush1.msra.mxu0 %v693
    %788 = vmatprep.subr.mxu0 0.0
    %789 = vmatpush1.msra.mxu0 %v692
    %790 = vmatprep.subr.mxu0 0.0
    %791 = vmatpush1.msra.mxu0 %v691
    %792 = vmatprep.subr.mxu0 0.0
    %793 = vmatpush1.msra.mxu0 %v690
    %794 = vmatprep.subr.mxu0 0.0
    %795 = vmatpush1.msra.mxu0 %v689
    %796 = vmatprep.subr.mxu0 0.0
    %797 = vmatpush1.msra.mxu0 %v688
    %798 = vmatprep.subr.mxu0 0.0
    %799 = vmatpush1.msra.mxu0 %v687
    %800 = vmatprep.subr.mxu0 0.0
    %801 = vmatpush1.msra.mxu0 %v686
    %802 = vmatprep.subr.mxu0 0.0
    %803 = vmatpush1.msra.mxu0 %v685
    %804 = vmatprep.subr.mxu0 0.0
    %805 = vmatpush2.msra.mxu0 %v716
    %806 = vmatprep.subr.mxu0 0.0
    %807 = vmatpush2.msra.mxu0 %v715
    %808 = vmatprep.subr.mxu0 0.0
    %809 = vmatpush2.msra.mxu0 %v714
    %810 = vmatprep.subr.mxu0 0.0
    %811 = vmatpush2.msra.mxu0 %v713
    %812 = vmatprep.subr.mxu0 0.0
    %813 = vmatpush2.msra.mxu0 %v712
    %814 = vmatprep.subr.mxu0 0.0
    %815 = vmatpush2.msra.mxu0 %v711
    %816 = vmatprep.subr.mxu0 0.0
    %817 = vmatpush2.msra.mxu0 %v710
    %818 = vmatprep.subr.mxu0 0.0
    %819 = vmatpush2.msra.mxu0 %v709
    %820 = vmatprep.subr.mxu0 0.0
    %821 = vmatpush2.msra.mxu0 %v708
    %822 = vmatprep.subr.mxu0 0.0
    %823 = vmatpush2.msra.mxu0 %v707
    %824 = vmatprep.subr.mxu0 0.0
    %825 = vmatpush2.msra.mxu0 %v706
    %826 = vmatprep.subr.mxu0 0.0
    %827 = vmatpush2.msra.mxu0 %v705
    %828 = vmatprep.subr.mxu0 0.0
    %829 = vmatpush2.msra.mxu0 %v704
    %830 = vmatprep.subr.mxu0 0.0
    %831 = vmatpush2.msra.mxu0 %v703
    %832 = vmatprep.subr.mxu0 0.0
    %833 = vmatpush2.msra.mxu0 %v702
    %834 = vmatprep.subr.mxu0 0.0
    %835 = vmatpush2.msra.mxu0 %v701
    %836 = vmatprep.mubr.f32.mxu0 %v766
    %837 = vmatmul.mubr.f32.gmra.mxu0 %v758
    %v838 = vpop.f32.mrf.mxu0
    %v839 = vadd.f32 0.0, %v838
    %v840 = vpop.f32.mrf.mxu0
    %841 = vdwg.mxu0
    %842 = vmatprep.subr.mxu0 0.0
    %843 = vmatpush1.msra.mxu0 %v732
    %844 = vmatprep.subr.mxu0 0.0
    %845 = vmatpush1.msra.mxu0 %v731
    %846 = vmatprep.subr.mxu0 0.0
    %847 = vmatpush1.msra.mxu0 %v730
    %848 = vmatprep.subr.mxu0 0.0
    %849 = vmatpush1.msra.mxu0 %v729
    %850 = vmatprep.subr.mxu0 0.0
    %851 = vmatpush1.msra.mxu0 %v728
    %852 = vmatprep.subr.mxu0 0.0
    %853 = vmatpush1.msra.mxu0 %v727
    %854 = vmatprep.subr.mxu0 0.0
    %855 = vmatpush1.msra.mxu0 %v726
    %856 = vmatprep.subr.mxu0 0.0
    %857 = vmatpush1.msra.mxu0 %v725
    %858 = vmatprep.subr.mxu0 0.0
    %859 = vmatpush1.msra.mxu0 %v724
    %860 = vmatprep.subr.mxu0 0.0
    %861 = vmatpush1.msra.mxu0 %v723
    %862 = vmatprep.subr.mxu0 0.0
    %863 = vmatpush1.msra.mxu0 %v722
    %864 = vmatprep.subr.mxu0 0.0
    %865 = vmatpush1.msra.mxu0 %v721
    %866 = vmatprep.subr.mxu0 0.0
    %867 = vmatpush1.msra.mxu0 %v720
    %868 = vmatprep.subr.mxu0 0.0
    %869 = vmatpush1.msra.mxu0 %v719
    %870 = vmatprep.subr.mxu0 0.0
    %871 = vmatpush1.msra.mxu0 %v718
    %872 = vmatprep.subr.mxu0 0.0
    %873 = vmatpush1.msra.mxu0 %v717
    %874 = vmatprep.subr.mxu0 0.0
    %875 = vmatpush2.msra.mxu0 %v748
    %876 = vmatprep.subr.mxu0 0.0
    %877 = vmatpush2.msra.mxu0 %v747
    %878 = vmatprep.subr.mxu0 0.0
    %879 = vmatpush2.msra.mxu0 %v746
    %880 = vmatprep.subr.mxu0 0.0
    %881 = vmatpush2.msra.mxu0 %v745
    %882 = vmatprep.subr.mxu0 0.0
    %883 = vmatpush2.msra.mxu0 %v744
    %884 = vmatprep.subr.mxu0 0.0
    %885 = vmatpush2.msra.mxu0 %v743
    %886 = vmatprep.subr.mxu0 0.0
    %887 = vmatpush2.msra.mxu0 %v742
    %888 = vmatprep.subr.mxu0 0.0
    %889 = vmatpush2.msra.mxu0 %v741
    %890 = vmatprep.subr.mxu0 0.0
    %891 = vmatpush2.msra.mxu0 %v740
    %892 = vmatprep.subr.mxu0 0.0
    %893 = vmatpush2.msra.mxu0 %v739
    %894 = vmatprep.subr.mxu0 0.0
    %895 = vmatpush2.msra.mxu0 %v738
    %896 = vmatprep.subr.mxu0 0.0
    %897 = vmatpush2.msra.mxu0 %v737
    %898 = vmatprep.subr.mxu0 0.0
    %899 = vmatpush2.msra.mxu0 %v736
    %900 = vmatprep.subr.mxu0 0.0
    %901 = vmatpush2.msra.mxu0 %v735
    %902 = vmatprep.subr.mxu0 0.0
    %903 = vmatpush2.msra.mxu0 %v734
    %904 = vmatprep.subr.mxu0 0.0
    %905 = vmatpush2.msra.mxu0 %v733
    %906 = vmatprep.mubr.f32.mxu0 %v767
    %907 = vmatmul.mubr.f32.gmra.mxu0 %v765
    %v908 = vpop.f32.mrf.mxu0
    %v909 = vadd.f32 %v839, %v908
    %v910 = vpop.f32.mrf.mxu0
    %911 = vdwg.mxu0
    %vm912 = vcmask 254976
    %913 = vst.msk [vmem:[#allocation4] sm:$0x3] %vm912, %v909
    %v914 = vld [vmem:[%s4] sm:$0xff]
    %v915 = vld [vmem:[%s4 + $0x8] sm:$0xff]
    %v916 = vld [vmem:[%s4 + $0x10] sm:$0xff]
    %v917 = vld [vmem:[%s4 + $0x18] sm:$0xff]
    %v918 = vld [vmem:[%s5] sm:$0x1]
    %v920 = vlaneseq
    %v921 = vshrl.u32 %v920, 7
    %v922 = vsub.s32 0, %v921
    %v923 = vrot.slane %v918, %v922
    %vm925 = vcmask 261120
    %v927 = vsel %vm925, %v909, 0
    %929 = vmatprep.subr.mxu0 0.0
    %930 = vmatpush1.msra.mxu0 0.0
    %931 = vmatprep.subr.mxu0 0.0
    %932 = vmatpush1.msra.mxu0 0.0
    %933 = vmatprep.subr.mxu0 0.0
    %934 = vmatpush1.msra.mxu0 0.0
    %935 = vmatprep.subr.mxu0 0.0
    %936 = vmatpush1.msra.mxu0 0.0
    %937 = vmatprep.subr.mxu0 0.0
    %938 = vmatpush1.msra.mxu0 0.0
    %939 = vmatprep.subr.mxu0 0.0
    %940 = vmatpush1.msra.mxu0 0.0
    %941 = vmatprep.subr.mxu0 0.0
    %942 = vmatpush1.msra.mxu0 0.0
    %943 = vmatprep.subr.mxu0 0.0
    %944 = vmatpush1.msra.mxu0 0.0
    %945 = vmatprep.subr.mxu0 0.0
    %946 = vmatpush1.msra.mxu0 0.0
    %947 = vmatprep.subr.mxu0 0.0
    %948 = vmatpush1.msra.mxu0 0.0
    %949 = vmatprep.subr.mxu0 0.0
    %950 = vmatpush1.msra.mxu0 0.0
    %951 = vmatprep.subr.mxu0 0.0
    %952 = vmatpush1.msra.mxu0 0.0
    %953 = vmatprep.subr.mxu0 0.0
    %954 = vmatpush1.msra.mxu0 %v917
    %955 = vmatprep.subr.mxu0 0.0
    %956 = vmatpush1.msra.mxu0 %v916
    %957 = vmatprep.subr.mxu0 0.0
    %958 = vmatpush1.msra.mxu0 %v915
    %959 = vmatprep.subr.mxu0 0.0
    %960 = vmatpush1.msra.mxu0 %v914
    %961 = vmatprep.subr.mxu0 0.0
    %962 = vmatpush2.msra.mxu0 0.0
    %963 = vmatprep.subr.mxu0 0.0
    %964 = vmatpush2.msra.mxu0 0.0
    %965 = vmatprep.subr.mxu0 0.0
    %966 = vmatpush2.msra.mxu0 0.0
    %967 = vmatprep.subr.mxu0 0.0
    %968 = vmatpush2.msra.mxu0 0.0
    %969 = vmatprep.subr.mxu0 0.0
    %970 = vmatpush2.msra.mxu0 0.0
    %971 = vmatprep.subr.mxu0 0.0
    %972 = vmatpush2.msra.mxu0 0.0
    %973 = vmatprep.subr.mxu0 0.0
    %974 = vmatpush2.msra.mxu0 0.0
    %975 = vmatprep.subr.mxu0 0.0
    %976 = vmatpush2.msra.mxu0 0.0
    %977 = vmatprep.subr.mxu0 0.0
    %978 = vmatpush2.msra.mxu0 0.0
    %979 = vmatprep.subr.mxu0 0.0
    %980 = vmatpush2.msra.mxu0 0.0
    %981 = vmatprep.subr.mxu0 0.0
    %982 = vmatpush2.msra.mxu0 0.0
    %983 = vmatprep.subr.mxu0 0.0
    %984 = vmatpush2.msra.mxu0 0.0
    %985 = vmatprep.subr.mxu0 0.0
    %986 = vmatpush2.msra.mxu0 0.0
    %987 = vmatprep.subr.mxu0 0.0
    %988 = vmatpush2.msra.mxu0 0.0
    %989 = vmatprep.subr.mxu0 0.0
    %990 = vmatpush2.msra.mxu0 0.0
    %991 = vmatprep.subr.mxu0 0.0
    %992 = vmatpush2.msra.mxu0 0.0
    %993 = vmatprep.mubr.f32.mxu0 0.0
    %994 = vmatmul.mubr.f32.gmra.mxu0 %v927
    %v995 = vpop.f32.mrf.mxu0
    %v996 = vadd.f32 %v923, %v995
    %v997 = vpop.f32.mrf.mxu0
    %998 = vdwg.mxu0
    %vm999 = vcmask 58368
    %1000 = vst.msk [vmem:[#allocation2] sm:$0x3] %vm999, %v996
    // Predicated region
    $region26: #{tpu_custom_call.1} parent=1 // pred_check
      _
    $region27: #{tpu_custom_call.1} parent=1 // pred_check_branch
      %1002 = sbr.rel (0) target = $region29
    $region28: #{tpu_custom_call.1} parent=1 // pred_region
      %s1004 = ssub.s32 32, 32
      %1005 = vsyncadd [#allocation3], %s1004
      %s1007 = sshll.u32 [#allocation2], 4
      %s1008 = int_to_ptr.vmem [resolvable:$true] %s1007
      %1010 = dma.vmem_to_hbm [thread:$0]  %s1008, 32, %s6, [#allocation3]
    $region29: #{tpu_custom_call.1} parent=1 // pred_fallthru
      _
    // Predicated region
    $region30: #{tpu_custom_call.1} parent=1 // pred_check
      _
    $region31: #{tpu_custom_call.1} parent=1 // pred_check_branch
      %1012 = sbr.rel (0) target = $region33
    $region32: #{tpu_custom_call.1} parent=1 // pred_region
      %s1014 = ssub.s32 32, 32
      %1015 = vsyncadd [#allocation5], %s1014
      %s1017 = sshll.u32 [#allocation4], 4
      %s1018 = int_to_ptr.vmem [resolvable:$true] %s1017
      %1020 = dma.vmem_to_hbm [thread:$0]  %s1018, 32, %s7, [#allocation5]
    $region33: #{tpu_custom_call.1} parent=1 // pred_fallthru
      _
    // Predicated region
    $region34: #{tpu_custom_call.1} parent=1 // pred_check
      _
    $region35: #{tpu_custom_call.1} parent=1 // pred_check_branch
      %1022 = sbr.rel (0) target = $region37
    $region36: #{tpu_custom_call.1} parent=1 // pred_region
      %1023 = dma.done [#allocation3], 32
    $region37: #{tpu_custom_call.1} parent=1 // pred_fallthru
      _
    // Predicated region
    $region38: #{tpu_custom_call.1} parent=1 // pred_check
      _
    $region39: #{tpu_custom_call.1} parent=1 // pred_check_branch
      %1025 = sbr.rel (0) target = $region41
    $region40: #{tpu_custom_call.1} parent=1 // pred_region
      %1026 = dma.done [#allocation5], 32
    $region41: #{tpu_custom_call.1} parent=1 // pred_fallthru
      _
    %1027 = vsyncpa [#allocation3], 1
    %1028 = vsyncpa [#allocation5], 1

</llo_original>
